<compile_context>
chip_gen: v7x
topology: tpu7x:2x2x1
jax: 0.10.0
libtpu: 0.0.40
codegen_flags: <defaults>
</compile_context>

<pallas_src>
import jax
import jax.numpy as jnp
from jax.experimental import pallas as pl
from jax.experimental.pallas import tpu as pltpu


def _compiler_params():
  # 32 MiB scoped VMEM is safe on v5e/v6e (128 MiB phys) and v7x (64 MiB phys);
  # per-tile working sets below are well under 1 MiB at these shapes.
  return pltpu.CompilerParams(dimension_semantics=("parallel",),
                              vmem_limit_bytes=32 * 1024 * 1024)


# ---------------------------------------------------------------------------
# Kernel 1: fused linear for all hop branches:  H = X @ Wcat + bcat
# ---------------------------------------------------------------------------
def _linear_kernel(x_ref, w_ref, b_ref, o_ref):
  o_ref[...] = (jnp.dot(x_ref[...], w_ref[...],
                        preferred_element_type=jnp.float32) + b_ref[...])


def _linear_call(x, w, b, *, tile_n):
  n, f = x.shape
  c = w.shape[1]
  assert n % tile_n == 0
  return pl.pallas_call(
      _linear_kernel,
      out_shape=jax.ShapeDtypeStruct((n, c), jnp.float32),
      grid_spec=pltpu.PrefetchScalarGridSpec(
          num_scalar_prefetch=0,
          grid=(n // tile_n,),
          in_specs=[pl.BlockSpec((tile_n, f), lambda i: (i, 0)),   # x row tile
                    pl.BlockSpec((f, c), lambda i: (0, 0)),        # resident W
                    pl.BlockSpec((1, c), lambda i: (0, 0))],       # resident b
          out_specs=pl.BlockSpec((tile_n, c), lambda i: (i, 0))),
      compiler_params=_compiler_params(),
      cost_estimate=pl.CostEstimate(
          flops=2 * n * f * c,
          transcendentals=0,
          bytes_accessed=4 * (n * f + f * c + c + n * c)),
  )(x, w, b)


# ---------------------------------------------------------------------------
# Kernel 2: one adjacency propagation hop:  Y = A @ H
# ---------------------------------------------------------------------------
def _propagate_kernel(adj_ref, h_ref, o_ref):
  o_ref[...] = jnp.dot(adj_ref[...], h_ref[...],
                       preferred_element_type=jnp.float32)


def _propagate_call(adj, h, *, tile_n):
  n = adj.shape[0]
  c = h.shape[1]
  assert n % tile_n == 0
  return pl.pallas_call(
      _propagate_kernel,
      out_shape=jax.ShapeDtypeStruct((n, c), jnp.float32),
      grid_spec=pltpu.PrefetchScalarGridSpec(
          num_scalar_prefetch=0,
          grid=(n // tile_n,),
          in_specs=[pl.BlockSpec((tile_n, n), lambda i: (i, 0)),   # A row tile
                    pl.BlockSpec((n, c), lambda i: (0, 0))],       # resident H
          out_specs=pl.BlockSpec((tile_n, c), lambda i: (i, 0))),
      compiler_params=_compiler_params(),
      cost_estimate=pl.CostEstimate(
          flops=2 * n * n * c,
          transcendentals=0,
          bytes_accessed=4 * (n * n + 2 * n * c)),
  )(adj, h)


# ---------------------------------------------------------------------------
# MixHopLayer forward
# ---------------------------------------------------------------------------
def mixhop_forward(x, adj, ws, bs, *, tile_n=128):
  """ws[k]: [F, O] (== lin_k.weight.T), bs[k]: [1, O];  returns [N, (K+1)*O]."""
  hops = len(ws) - 1
  o = ws[0].shape[1]
  tile_n = min(tile_n, x.shape[0])
  wcat = jnp.concatenate(ws, axis=1)                    # [F, (K+1)*O]
  bcat = jnp.concatenate(bs, axis=1)                    # [1, (K+1)*O]
  h = _linear_call(x, wcat, bcat, tile_n=tile_n)        # [N, (K+1)*O]
  outs = [h[:, :o]]                                     # hop 0: lin_0(x)
  pending = h[:, o:]                                    # lin_1(x) | ... | lin_K(x)
  for _ in range(hops):
    pending = _propagate_call(adj, pending, tile_n=tile_n)  # one more hop for all
    outs.append(pending[:, :o])                         # leftmost block is finished
    pending = pending[:, o:]
  return jnp.concatenate(outs, axis=1)


# ----------------------- pure-JAX reference (for checking) -----------------
def mixhop_ref(x, adj, ws, bs):
  hp = jax.lax.Precision.HIGHEST
  outs = [jnp.dot(x, ws[0], precision=hp) + bs[0]]
  for j in range(1, len(ws)):
    xj = jnp.dot(x, ws[j], precision=hp) + bs[j]
    for _ in range(j):
      xj = jnp.dot(adj, xj, precision=hp)
    outs.append(xj)
  return jnp.concatenate(outs, axis=1)


if __name__ == "__main__":
  key = jax.random.PRNGKey(0)
  N, F, O, HOPS = 256, 64, 128, 2
  ks = jax.random.split(key, 3 + 2 * (HOPS + 1))

  # node features
  x = jax.random.normal(ks[0], (N, F), dtype=jnp.float32)

  # dense adjacency: ring + random edges + self loops, row-normalized (D^-1 A)
  ring_src = jnp.arange(N, dtype=jnp.int32)
  ring_dst = (ring_src + 1) % N
  n_extra = 4 * N
  rand_src = jax.random.randint(ks[1], (n_extra,), 0, N, dtype=jnp.int32)
  rand_dst = jax.random.randint(ks[2], (n_extra,), 0, N, dtype=jnp.int32)
  src = jnp.concatenate([ring_src, rand_src])
  dst = jnp.concatenate([ring_dst, rand_dst])
  adj = jnp.zeros((N, N), jnp.float32).at[dst, src].set(1.0)
  adj = jnp.maximum(adj, jnp.eye(N, dtype=jnp.float32))
  adj = adj / jnp.sum(adj, axis=1, keepdims=True)

  # nn.Linear default init: U(-1/sqrt(fan_in), 1/sqrt(fan_in)) for W and b.
  def init_lin(kw, kb, fin, fout):
    bound = 1.0 / float(fin) ** 0.5
    w = jax.random.uniform(kw, (fin, fout), jnp.float32, -bound, bound)
    b = jax.random.uniform(kb, (1, fout), jnp.float32, -bound, bound)
    return w, b

  ws, bs = [], []
  for k in range(HOPS + 1):
    w, b = init_lin(ks[3 + 2 * k], ks[4 + 2 * k], F, O)
    ws.append(w)
    bs.append(b)

  out = mixhop_forward(x, adj, ws, bs, tile_n=128)
  out = jax.block_until_ready(out)
  assert out.shape == (N, (HOPS + 1) * O)

  ref = mixhop_ref(x, adj, ws, bs)
  max_err = float(jnp.max(jnp.abs(out - ref)))
  assert jnp.allclose(out, ref, atol=2e-3, rtol=2e-3), f"mismatch: {max_err}"

  print("KERNEL_OK")
</pallas_src>

<mosaic_0001>
module attributes {stable_mosaic.version = 11 : i64} {
  func.func @_linear_kernel(%arg0: i32, %arg1: memref<128x64xf32, #tpu.memory_space<vmem>>, %arg2: memref<64x384xf32, #tpu.memory_space<vmem>>, %arg3: memref<1x384xf32, #tpu.memory_space<vmem>>, %arg4: memref<128x384xf32, #tpu.memory_space<vmem>>) attributes {dimension_semantics = [#tpu.dimension_semantics<parallel>], iteration_bounds = array<i64: 2>, scalar_prefetch = 0 : i64, scratch_operands = 0 : i64, tpu.core_type = #tpu.core_type<tc>, window_params = [{transform_indices = @transform_0, window_bounds = array<i64: 128, 64>}, {pipeline_mode = #tpu.pipeline_mode<synchronous>, transform_indices = @transform_1, window_bounds = array<i64: 64, 384>}, {pipeline_mode = #tpu.pipeline_mode<synchronous>, transform_indices = @transform_2, window_bounds = array<i64: 1, 384>}, {transform_indices = @transform_3, window_bounds = array<i64: 128, 384>}]} {
    %c0 = arith.constant 0 : index
    %c0_0 = arith.constant 0 : index
    %0 = vector.load %arg1[%c0, %c0_0] : memref<128x64xf32, #tpu.memory_space<vmem>>, vector<128x64xf32>
    %c0_1 = arith.constant 0 : index
    %c0_2 = arith.constant 0 : index
    %1 = vector.load %arg2[%c0_1, %c0_2] : memref<64x384xf32, #tpu.memory_space<vmem>>, vector<64x384xf32>
    %cst = arith.constant dense<0.000000e+00> : vector<128x384xf32>
    %2 = tpu.matmul %0, %1, %cst {dimension_numbers = #tpu.dot_dimension_numbers<[1], [0], [0], [1], [0, 0, 1, 1], [], []>} : vector<128x64xf32>, vector<64x384xf32>, vector<128x384xf32> -> vector<128x384xf32>
    %c0_3 = arith.constant 0 : index
    %c0_4 = arith.constant 0 : index
    %3 = vector.load %arg3[%c0_3, %c0_4] : memref<1x384xf32, #tpu.memory_space<vmem>>, vector<1x384xf32>
    %4 = vector.broadcast %3 : vector<1x384xf32> to vector<128x384xf32>
    %5 = arith.addf %2, %4 : vector<128x384xf32>
    %c0_5 = arith.constant 0 : index
    %c0_6 = arith.constant 0 : index
    %6 = vector.load %arg4[%c0_5, %c0_6] : memref<128x384xf32, #tpu.memory_space<vmem>>, vector<128x384xf32>
    tpu.vector_store %arg4[%c0_5, %c0_6], %5 {strides = array<i32>} : memref<128x384xf32, #tpu.memory_space<vmem>>, vector<128x384xf32>,
    return
  }
  func.func @transform_0(%arg0: i32) -> (i32, i32) {
    %c0_i32 = arith.constant 0 : i32
    %c0_i32_0 = arith.constant 0 : i32
    return %arg0, %c0_i32 : i32, i32
  }
  func.func @transform_1(%arg0: i32) -> (i32, i32) {
    %c0_i32 = arith.constant 0 : i32
    %c0_i32_0 = arith.constant 0 : i32
    %c0_i32_1 = arith.constant 0 : i32
    return %c0_i32, %c0_i32_0 : i32, i32
  }
  func.func @transform_2(%arg0: i32) -> (i32, i32) {
    %c0_i32 = arith.constant 0 : i32
    %c0_i32_0 = arith.constant 0 : i32
    %c0_i32_1 = arith.constant 0 : i32
    return %c0_i32, %c0_i32_0 : i32, i32
  }
  func.func @transform_3(%arg0: i32) -> (i32, i32) {
    %c0_i32 = arith.constant 0 : i32
    %c0_i32_0 = arith.constant 0 : i32
    return %arg0, %c0_i32 : i32, i32
  }
}

</mosaic_0001>

<llo_original>
// kernel: tpu_custom_call.1
$region0: #{tpu_custom_call.1}
  #allocation0 [shape = 'u32[]', space=smem, size = 0x4, offset = 0x4, fixed_abs, tag = 'smem constant byte address 0x4 - core index']
  #allocation1 [shape = 'u32[144,128]{1,0:T(1,128)}', space=vmem, size = 0x12000, scoped, tag = 'internal scratch']
  %s0 = inlined_call_operand.vmem [shape: f32[256,64], index: 0, kind: input, shape index: {}]
  %s1 = inlined_call_operand.vmem [shape: f32[64,384], index: 1, kind: input, shape index: {}]
  %s2 = inlined_call_operand.vmem [shape: f32[1,384], index: 2, kind: input, shape index: {}]
  %s3 = inlined_call_operand.hbm [shape: f32[256,384], index: 3, kind: output, shape index: {}]
  %s4 = sld [smem:[#allocation0]]
  $region45: #{tpu_custom_call.1} parent=0
    _
  %s6 = ssub.s32 1, %s4
  %s7 = scalar_select 0, %s6, %s4
  $region1: #{tpu_custom_call.1} parent=0
    #allocation2 [shape = 'u8[393216]{0}', space=vmem, size = 0x60000, scoped, tag = 'output window, operand 0']
    #allocation3 [shape = 's32[2]{0}', space=sflag, size = 0x8, scoped, tag = 'scoped memory for tpu_custom_call.1']
    %8 = vsyncpa [#allocation3], 0
    %s9 = scalar_lea.sflag [#allocation3], 1
    %10 = vsyncpa %s9, 0
    loop: start=0, step=1, limit=4
    $region2: #{tpu_custom_call.1} parent=1 // loop_pre_header
      _
    $region3: #{tpu_custom_call.1} parent=1 // loop_header
      %s12 = sphi 0, %s16
      %p13 = scmp.ge.s32.totalorder %s12, 4
      %s22 = sphi 0, %s24
      %s25 = sphi 0, %s22
      %s26 = sphi 0, %s25
      %s42 = sphi 0, %s26
      %s46 = sphi 0, %s46
      %s48 = sphi 0, %s46
      %s49 = sphi 0, %s48
      %s63 = sphi 0, %s49
      %s67 = sphi 0, %s67
      %s69 = sphi 0, %s67
      %s70 = sphi 0, %s69
      %s84 = sphi 0, %s70
      %s90 = sphi 0, %s92
      %s93 = sphi 0, %s90
      %s94 = sphi 0, %s93
      %s110 = sphi 0, %s94
    $region4: #{tpu_custom_call.1} parent=1 // loop_header_branch
      %15 = sbr.rel (%p13) target = $region8
    $region5: #{tpu_custom_call.1} parent=1 // loop_body
      %s17 = ssub.s32 %s12, 1
      %s18 = ssub.s32 %s12, 2
      %s19 = sadd.s32 %s12, 1
      %s20 = ssub.s32 %s12, %s19
      %p21 = scmp.eq.s32.totalorder %s20, 0
      %s23 = sadd.s32 %s22, 1
      %s24 = scalar_select %p21, %s22, %s23
      %p27 = pneg %p21
      %p28 = scmp.eq.s32.totalorder %s12, 1
      %p29 = por %p27, %p28
      %p30 = scmp.ne.s32.totalorder %s22, %s25
      %p31 = scmp.eq.s32.totalorder %s12, 0
      %p32 = por %p30, %p31
      %p33 = scmp.ne.s32.totalorder %s22, %s25
      %p34 = scmp.eq.s32.totalorder %s17, 1
      %p35 = por %p33, %p34
      %p36 = scmp.ne.s32.totalorder %s25, %s26
      %p37 = scmp.eq.s32.totalorder %s17, 0
      %p38 = por %p36, %p37
      %p39 = scmp.ne.s32.totalorder %s25, %s26
      %p40 = scmp.eq.s32.totalorder %s18, 1
      %p41 = por %p39, %p40
      %p43 = scmp.ne.s32.totalorder %s26, %s42
      %p44 = scmp.eq.s32.totalorder %s18, 0
      %p45 = por %p43, %p44
      %s47 = sadd.s32 %s46, 1
      %p50 = scmp.eq.s32.totalorder %s12, 1
      %p51 = scmp.ne.s32.totalorder %s46, %s48
      %p52 = scmp.eq.s32.totalorder %s12, 0
      %p53 = por %p51, %p52
      %p54 = scmp.ne.s32.totalorder %s46, %s48
      %p55 = scmp.eq.s32.totalorder %s17, 1
      %p56 = por %p54, %p55
      %p57 = scmp.ne.s32.totalorder %s48, %s49
      %p58 = scmp.eq.s32.totalorder %s17, 0
      %p59 = por %p57, %p58
      %p60 = scmp.ne.s32.totalorder %s48, %s49
      %p61 = scmp.eq.s32.totalorder %s18, 1
      %p62 = por %p60, %p61
      %p64 = scmp.ne.s32.totalorder %s49, %s63
      %p65 = scmp.eq.s32.totalorder %s18, 0
      %p66 = por %p64, %p65
      %s68 = sadd.s32 %s67, 1
      %p71 = scmp.eq.s32.totalorder %s12, 1
      %p72 = scmp.ne.s32.totalorder %s67, %s69
      %p73 = scmp.eq.s32.totalorder %s12, 0
      %p74 = por %p72, %p73
      %p75 = scmp.ne.s32.totalorder %s67, %s69
      %p76 = scmp.eq.s32.totalorder %s17, 1
      %p77 = por %p75, %p76
      %p78 = scmp.ne.s32.totalorder %s69, %s70
      %p79 = scmp.eq.s32.totalorder %s17, 0
      %p80 = por %p78, %p79
      %p81 = scmp.ne.s32.totalorder %s69, %s70
      %p82 = scmp.eq.s32.totalorder %s18, 1
      %p83 = por %p81, %p82
      %p85 = scmp.ne.s32.totalorder %s70, %s84
      %p86 = scmp.eq.s32.totalorder %s18, 0
      %p87 = por %p85, %p86
      %s88 = ssub.s32 %s12, %s19
      %p89 = scmp.eq.s32.totalorder %s88, 0
      %s91 = sadd.s32 %s90, 1
      %s92 = scalar_select %p89, %s90, %s91
      %p95 = pneg %p89
      %p96 = scmp.eq.s32.totalorder %s12, 1
      %p97 = por %p95, %p96
      %p98 = scmp.ne.s32.totalorder %s90, %s93
      %p99 = scmp.eq.s32.totalorder %s12, 0
      %p100 = por %p98, %p99
      %p101 = scmp.ne.s32.totalorder %s90, %s93
      %p102 = scmp.eq.s32.totalorder %s17, 1
      %p103 = por %p101, %p102
      %p104 = scmp.ne.s32.totalorder %s93, %s94
      %p105 = scmp.eq.s32.totalorder %s17, 0
      %p106 = por %p104, %p105
      %p107 = scmp.ne.s32.totalorder %s93, %s94
      %p108 = scmp.eq.s32.totalorder %s18, 1
      %p109 = por %p107, %p108
      %p111 = scmp.ne.s32.totalorder %s94, %s110
      %p112 = scmp.eq.s32.totalorder %s18, 0
      %p113 = por %p111, %p112
      %p114 = scmp.le.s32.totalorder 1, %s12
      %p115 = scmp.lt.s32.totalorder %s12, 3
      %p116 = pnand %p114, %p115
      %p117 = pneg %p116
      // Predicated region
      $region9: #{tpu_custom_call.1} parent=5 // pred_check
        _
      $region10: #{tpu_custom_call.1} parent=5 // pred_check_branch
        %119 = sbr.rel (%p116) target = $region12
      $region11: #{tpu_custom_call.1} parent=5 // pred_region
        %s120 = ssub.s32 %s12, 1
        // Predicated region
        $region13: #{tpu_custom_call.1} parent=11 // pred_check
          %p121 = pneg %p59
        $region14: #{tpu_custom_call.1} parent=11 // pred_check_branch
          %123 = sbr.rel (%p121) target = $region16
        $region15: #{tpu_custom_call.1} parent=11 // pred_region
          _
        $region16: #{tpu_custom_call.1} parent=11 // pred_fallthru
          _
        // Predicated region
        $region17: #{tpu_custom_call.1} parent=11 // pred_check
          %p124 = pneg %p80
        $region18: #{tpu_custom_call.1} parent=11 // pred_check_branch
          %126 = sbr.rel (%p124) target = $region20
        $region19: #{tpu_custom_call.1} parent=11 // pred_region
          _
        $region20: #{tpu_custom_call.1} parent=11 // pred_fallthru
          _
      $region12: #{tpu_custom_call.1} parent=5 // pred_fallthru
        _
      %p127 = scmp.lt.s32.totalorder %s12, 2
      // Predicated region
      $region21: #{tpu_custom_call.1} parent=5 // pred_check
        %p128 = pneg %p127
      $region22: #{tpu_custom_call.1} parent=5 // pred_check_branch
        %130 = sbr.rel (%p128) target = $region24
      $region23: #{tpu_custom_call.1} parent=5 // pred_region
        // Predicated region
        $region25: #{tpu_custom_call.1} parent=23 // pred_check
          %p131 = pneg %p32
        $region26: #{tpu_custom_call.1} parent=23 // pred_check_branch
          %133 = sbr.rel (%p131) target = $region28
        $region27: #{tpu_custom_call.1} parent=23 // pred_region
          %s134 = smul.u32 16, %s12
          %p135 = scmp.lt.s32.totalorder %s134, 31
          %s136 = scalar_select %p135, %s134, 31
          %s137 = smul.addr %s136, 8
          %s138 = scalar_lea.vmem %s0, %s137
          %s139 = smul.u32 16, %s12
        $region28: #{tpu_custom_call.1} parent=23 // pred_fallthru
          _
      $region24: #{tpu_custom_call.1} parent=5 // pred_fallthru
        _
      %p140 = scmp.le.s32.totalorder 1, %s12
      %p141 = scmp.lt.s32.totalorder %s12, 3
      %p142 = pnand %p140, %p141
      %p143 = pneg %p142
      // Predicated region
      $region29: #{tpu_custom_call.1} parent=5 // pred_check
        _
      $region30: #{tpu_custom_call.1} parent=5 // pred_check_branch
        %145 = sbr.rel (%p142) target = $region32
      $region31: #{tpu_custom_call.1} parent=5 // pred_region
        %s146 = ssub.s32 %s12, 1
        %s147 = smul.u32 16, %s17
        %p148 = scmp.lt.s32.totalorder %s147, 31
        %s149 = scalar_select %p148, %s147, 31
        %s150 = smul.addr %s149, 8
        %s151 = scalar_lea.vmem %s0, %s150
        %p152 = pneg %p38
        %p153 = pneg %p35
        %p154 = pneg %p59
        %p155 = pneg %p56
        %p156 = pneg %p80
        %p157 = pneg %p77
        %p158 = pneg %p106
        %p159 = pneg %p103
        %s160 = sand.u32 %s93, 1
        %s161 = scalar_lea.sflag [#allocation3], %s160
        %s162 = sand.u32 %s93, 1
        %s163 = smul.addr %s162, 384
        %s164 = scalar_lea.vmem [#allocation2], %s163
        %s165 = smul.u32 16, %s17
        %p166 = scmp.lt.s32.totalorder %s165, 31
        %s167 = scalar_select %p166, %s165, 31
        %s168 = smul.addr %s167, 8
        %s169 = scalar_lea.vmem %s0, %s168
        %s170 = smul.u32 16, %s17
        %s171 = smul.u32 16, %s17
        %v172 = vld [vmem:[%s169] sm:$0xff]
        %v173 = vld [vmem:[%s169 + $0x8] sm:$0xff]
        %v174 = vld [vmem:[%s169 + $0x10] sm:$0xff]
        %v175 = vld [vmem:[%s169 + $0x18] sm:$0xff]
        %v176 = vld [vmem:[%s169 + $0x20] sm:$0xff]
        %v177 = vld [vmem:[%s169 + $0x28] sm:$0xff]
        %v178 = vld [vmem:[%s169 + $0x30] sm:$0xff]
        %v179 = vld [vmem:[%s169 + $0x38] sm:$0xff]
        %v180 = vld [vmem:[%s169 + $0x40] sm:$0xff]
        %v181 = vld [vmem:[%s169 + $0x48] sm:$0xff]
        %v182 = vld [vmem:[%s169 + $0x50] sm:$0xff]
        %v183 = vld [vmem:[%s169 + $0x58] sm:$0xff]
        %v184 = vld [vmem:[%s169 + $0x60] sm:$0xff]
        %v185 = vld [vmem:[%s169 + $0x68] sm:$0xff]
        %v186 = vld [vmem:[%s169 + $0x70] sm:$0xff]
        %v187 = vld [vmem:[%s169 + $0x78] sm:$0xff]
        %v188 = vld [vmem:[%s1] sm:$0xff]
        %v189 = vld [vmem:[%s1 + $0x8] sm:$0xff]
        %v190 = vld [vmem:[%s1 + $0x10] sm:$0xff]
        %v191 = vld [vmem:[%s1 + $0x18] sm:$0xff]
        %v192 = vld [vmem:[%s1 + $0x20] sm:$0xff]
        %v193 = vld [vmem:[%s1 + $0x28] sm:$0xff]
        %v194 = vld [vmem:[%s1 + $0x30] sm:$0xff]
        %v195 = vld [vmem:[%s1 + $0x38] sm:$0xff]
        %v196 = vld [vmem:[%s1 + $0x40] sm:$0xff]
        %v197 = vld [vmem:[%s1 + $0x48] sm:$0xff]
        %v198 = vld [vmem:[%s1 + $0x50] sm:$0xff]
        %v199 = vld [vmem:[%s1 + $0x58] sm:$0xff]
        %v200 = vld [vmem:[%s1 + $0x60] sm:$0xff]
        %v201 = vld [vmem:[%s1 + $0x68] sm:$0xff]
        %v202 = vld [vmem:[%s1 + $0x70] sm:$0xff]
        %v203 = vld [vmem:[%s1 + $0x78] sm:$0xff]
        %v204 = vld [vmem:[%s1 + $0x80] sm:$0xff]
        %v205 = vld [vmem:[%s1 + $0x88] sm:$0xff]
        %v206 = vld [vmem:[%s1 + $0x90] sm:$0xff]
        %v207 = vld [vmem:[%s1 + $0x98] sm:$0xff]
        %v208 = vld [vmem:[%s1 + $0xa0] sm:$0xff]
        %v209 = vld [vmem:[%s1 + $0xa8] sm:$0xff]
        %v210 = vld [vmem:[%s1 + $0xb0] sm:$0xff]
        %v211 = vld [vmem:[%s1 + $0xb8] sm:$0xff]
        %v212 = vld [vmem:[%s2] sm:$0x7]
        %v214 = vlaneseq
        %v215 = vshrl.u32 %v214, 7
        %v216 = vsub.s32 0, %v215
        %v217 = vrot.slane %v212, %v216
        %v218 = vlaneseq
        %v219 = vshrl.u32 %v218, 7
        %v220 = vsub.s32 1, %v219
        %v221 = vrot.slane %v212, %v220
        %v222 = vlaneseq
        %v223 = vshrl.u32 %v222, 7
        %v224 = vsub.s32 2, %v223
        %v225 = vrot.slane %v212, %v224
        %vm229 = vcmask 523264
        %v231 = vsel %vm229, %v172, 0
        %v234 = vsel %vm229, %v173, 0
        %v237 = vsel %vm229, %v174, 0
        %v240 = vsel %vm229, %v175, 0
        %v243 = vsel %vm229, %v176, 0
        %v246 = vsel %vm229, %v177, 0
        %v249 = vsel %vm229, %v178, 0
        %v252 = vsel %vm229, %v179, 0
        %v255 = vsel %vm229, %v180, 0
        %v258 = vsel %vm229, %v181, 0
        %v261 = vsel %vm229, %v182, 0
        %v264 = vsel %vm229, %v183, 0
        %v267 = vsel %vm229, %v184, 0
        %v270 = vsel %vm229, %v185, 0
        %v273 = vsel %vm229, %v186, 0
        %v276 = vsel %vm229, %v187, 0
        %278 = vmatprep.subr.mxu0 %v189
        %279 = vmatpush1.msra.mxu0 %v188
        %280 = vmatprep.subr.mxu0 %v192
        %281 = vmatpush1.msra.mxu0 %v191
        %282 = vmatprep.subr.mxu0 %v195
        %283 = vmatpush1.msra.mxu0 %v194
        %284 = vmatprep.subr.mxu0 %v198
        %285 = vmatpush1.msra.mxu0 %v197
        %286 = vmatprep.subr.mxu0 %v201
        %287 = vmatpush1.msra.mxu0 %v200
        %288 = vmatprep.subr.mxu0 %v204
        %289 = vmatpush1.msra.mxu0 %v203
        %290 = vmatprep.subr.mxu0 %v207
        %291 = vmatpush1.msra.mxu0 %v206
        %292 = vmatprep.subr.mxu0 %v210
        %293 = vmatpush1.msra.mxu0 %v209
        %294 = vmatprep.subr.mxu0 0.0
        %295 = vmatpush1.msra.mxu0 0.0
        %296 = vmatprep.subr.mxu0 0.0
        %297 = vmatpush1.msra.mxu0 0.0
        %298 = vmatprep.subr.mxu0 0.0
        %299 = vmatpush1.msra.mxu0 0.0
        %300 = vmatprep.subr.mxu0 0.0
        %301 = vmatpush1.msra.mxu0 0.0
        %302 = vmatprep.subr.mxu0 0.0
        %303 = vmatpush1.msra.mxu0 0.0
        %304 = vmatprep.subr.mxu0 0.0
        %305 = vmatpush1.msra.mxu0 0.0
        %306 = vmatprep.subr.mxu0 0.0
        %307 = vmatpush1.msra.mxu0 0.0
        %308 = vmatprep.subr.mxu0 0.0
        %309 = vmatpush1.msra.mxu0 0.0
        %310 = vmatprep.subr.mxu0 0.0
        %311 = vmatpush1.msra.mxu0 0.0
        %312 = vmatprep.subr.mxu0 0.0
        %313 = vmatpush1.msra.mxu0 0.0
        %314 = vmatprep.subr.mxu0 0.0
        %315 = vmatpush1.msra.mxu0 0.0
        %316 = vmatprep.subr.mxu0 0.0
        %317 = vmatpush1.msra.mxu0 0.0
        %318 = vmatprep.subr.mxu0 0.0
        %319 = vmatpush1.msra.mxu0 0.0
        %320 = vmatprep.subr.mxu0 0.0
        %321 = vmatpush1.msra.mxu0 0.0
        %322 = vmatprep.subr.mxu0 0.0
        %323 = vmatpush1.msra.mxu0 0.0
        %324 = vmatprep.subr.mxu0 0.0
        %325 = vmatpush1.msra.mxu0 0.0
        %326 = vmatprep.subr.mxu0 0.0
        %327 = vmatpush1.msra.mxu0 0.0
        %328 = vmatprep.subr.mxu0 0.0
        %329 = vmatpush1.msra.mxu0 0.0
        %330 = vmatprep.subr.mxu0 0.0
        %331 = vmatpush1.msra.mxu0 0.0
        %332 = vmatprep.subr.mxu0 0.0
        %333 = vmatpush1.msra.mxu0 0.0
        %334 = vmatprep.subr.mxu0 0.0
        %335 = vmatpush1.msra.mxu0 0.0
        %336 = vmatprep.subr.mxu0 0.0
        %337 = vmatpush1.msra.mxu0 0.0
        %338 = vmatprep.subr.mxu0 0.0
        %339 = vmatpush1.msra.mxu0 0.0
        %340 = vmatprep.subr.mxu0 0.0
        %341 = vmatpush1.msra.mxu0 0.0
        %342 = vmatprep.mubr.f32.mxu0 0.0
        %343 = vmatmul.mubr.f32.gmra.mrb[0].mxu0 %v231
        %v344 = vpop.f32.mrb[0].mxu0
        %v345 = vadd.f32 %v217, %v344
        %v346 = vpop.f32.mrb[0].mxu0
        %v347 = vadd.f32 %v221, %v346
        %348 = vmatprep.mubr.f32.mxu0 0.0
        %349 = vmatmul.mubr.f32.gmra.mrb[0].mxu0 %v234
        %v350 = vpop.f32.mrb[0].mxu0
        %v351 = vadd.f32 %v217, %v350
        %v352 = vpop.f32.mrb[0].mxu0
        %v353 = vadd.f32 %v221, %v352
        %354 = vmatprep.mubr.f32.mxu0 0.0
        %355 = vmatmul.mubr.f32.gmra.mrb[0].mxu0 %v237
        %v356 = vpop.f32.mrb[0].mxu0
        %v357 = vadd.f32 %v217, %v356
        %v358 = vpop.f32.mrb[0].mxu0
        %v359 = vadd.f32 %v221, %v358
        %360 = vmatprep.mubr.f32.mxu0 0.0
        %361 = vmatmul.mubr.f32.gmra.mrb[0].mxu0 %v240
        %v362 = vpop.f32.mrb[0].mxu0
        %v363 = vadd.f32 %v217, %v362
        %v364 = vpop.f32.mrb[0].mxu0
        %v365 = vadd.f32 %v221, %v364
        %366 = vmatprep.mubr.f32.mxu0 0.0
        %367 = vmatmul.mubr.f32.gmra.mrb[0].mxu0 %v243
        %v368 = vpop.f32.mrb[0].mxu0
        %v369 = vadd.f32 %v217, %v368
        %v370 = vpop.f32.mrb[0].mxu0
        %v371 = vadd.f32 %v221, %v370
        %372 = vmatprep.mubr.f32.mxu0 0.0
        %373 = vmatmul.mubr.f32.gmra.mrb[0].mxu0 %v246
        %v374 = vpop.f32.mrb[0].mxu0
        %v375 = vadd.f32 %v217, %v374
        %v376 = vpop.f32.mrb[0].mxu0
        %v377 = vadd.f32 %v221, %v376
        %378 = vmatprep.mubr.f32.mxu0 0.0
        %379 = vmatmul.mubr.f32.gmra.mrb[0].mxu0 %v249
        %v380 = vpop.f32.mrb[0].mxu0
        %v381 = vadd.f32 %v217, %v380
        %v382 = vpop.f32.mrb[0].mxu0
        %v383 = vadd.f32 %v221, %v382
        %384 = vmatprep.mubr.f32.mxu0 0.0
        %385 = vmatmul.mubr.f32.gmra.mrb[0].mxu0 %v252
        %v386 = vpop.f32.mrb[0].mxu0
        %v387 = vadd.f32 %v217, %v386
        %v388 = vpop.f32.mrb[0].mxu0
        %v389 = vadd.f32 %v221, %v388
        %390 = vmatprep.mubr.f32.mxu0 0.0
        %391 = vmatmul.mubr.f32.gmra.mrb[0].mxu0 %v255
        %v392 = vpop.f32.mrb[0].mxu0
        %v393 = vadd.f32 %v217, %v392
        %v394 = vpop.f32.mrb[0].mxu0
        %v395 = vadd.f32 %v221, %v394
        %396 = vmatprep.mubr.f32.mxu0 0.0
        %397 = vmatmul.mubr.f32.gmra.mrb[0].mxu0 %v258
        %v398 = vpop.f32.mrb[0].mxu0
        %v399 = vadd.f32 %v217, %v398
        %v400 = vpop.f32.mrb[0].mxu0
        %v401 = vadd.f32 %v221, %v400
        %402 = vmatprep.mubr.f32.mxu0 0.0
        %403 = vmatmul.mubr.f32.gmra.mrb[0].mxu0 %v261
        %v404 = vpop.f32.mrb[0].mxu0
        %v405 = vadd.f32 %v217, %v404
        %v406 = vpop.f32.mrb[0].mxu0
        %v407 = vadd.f32 %v221, %v406
        %408 = vmatprep.mubr.f32.mxu0 0.0
        %409 = vmatmul.mubr.f32.gmra.mrb[0].mxu0 %v264
        %v410 = vpop.f32.mrb[0].mxu0
        %v411 = vadd.f32 %v217, %v410
        %v412 = vpop.f32.mrb[0].mxu0
        %v413 = vadd.f32 %v221, %v412
        %414 = vmatprep.mubr.f32.mxu0 0.0
        %415 = vmatmul.mubr.f32.gmra.mrb[0].mxu0 %v267
        %v416 = vpop.f32.mrb[0].mxu0
        %v417 = vadd.f32 %v217, %v416
        %v418 = vpop.f32.mrb[0].mxu0
        %v419 = vadd.f32 %v221, %v418
        %420 = vmatprep.mubr.f32.mxu0 0.0
        %421 = vmatmul.mubr.f32.gmra.mrb[0].mxu0 %v270
        %v422 = vpop.f32.mrb[0].mxu0
        %v423 = vadd.f32 %v217, %v422
        %v424 = vpop.f32.mrb[0].mxu0
        %v425 = vadd.f32 %v221, %v424
        %426 = vmatprep.mubr.f32.mxu0 0.0
        %427 = vmatmul.mubr.f32.gmra.mrb[0].mxu0 %v273
        %v428 = vpop.f32.mrb[0].mxu0
        %v429 = vadd.f32 %v217, %v428
        %v430 = vpop.f32.mrb[0].mxu0
        %v431 = vadd.f32 %v221, %v430
        %432 = vmatprep.mubr.f32.mxu0 0.0
        %433 = vmatmul.mubr.f32.gmra.mrb[0].mxu0 %v276
        %v434 = vpop.f32.mrb[0].mxu0
        %v435 = vadd.f32 %v217, %v434
        %v436 = vpop.f32.mrb[0].mxu0
        %v437 = vadd.f32 %v221, %v436
        %438 = vdwg.mxu0
        %439 = vmatprep.subr.mxu0 0.0
        %440 = vmatpush1.msra.mxu0 %v190
        %441 = vmatprep.subr.mxu0 0.0
        %442 = vmatpush1.msra.mxu0 %v193
        %443 = vmatprep.subr.mxu0 0.0
        %444 = vmatpush1.msra.mxu0 %v196
        %445 = vmatprep.subr.mxu0 0.0
        %446 = vmatpush1.msra.mxu0 %v199
        %447 = vmatprep.subr.mxu0 0.0
        %448 = vmatpush1.msra.mxu0 %v202
        %449 = vmatprep.subr.mxu0 0.0
        %450 = vmatpush1.msra.mxu0 %v205
        %451 = vmatprep.subr.mxu0 0.0
        %452 = vmatpush1.msra.mxu0 %v208
        %453 = vmatprep.subr.mxu0 0.0
        %454 = vmatpush1.msra.mxu0 %v211
        %455 = vmatprep.subr.mxu0 0.0
        %456 = vmatpush1.msra.mxu0 0.0
        %457 = vmatprep.subr.mxu0 0.0
        %458 = vmatpush1.msra.mxu0 0.0
        %459 = vmatprep.subr.mxu0 0.0
        %460 = vmatpush1.msra.mxu0 0.0
        %461 = vmatprep.subr.mxu0 0.0
        %462 = vmatpush1.msra.mxu0 0.0
        %463 = vmatprep.subr.mxu0 0.0
        %464 = vmatpush1.msra.mxu0 0.0
        %465 = vmatprep.subr.mxu0 0.0
        %466 = vmatpush1.msra.mxu0 0.0
        %467 = vmatprep.subr.mxu0 0.0
        %468 = vmatpush1.msra.mxu0 0.0
        %469 = vmatprep.subr.mxu0 0.0
        %470 = vmatpush1.msra.mxu0 0.0
        %471 = vmatprep.subr.mxu0 0.0
        %472 = vmatpush1.msra.mxu0 0.0
        %473 = vmatprep.subr.mxu0 0.0
        %474 = vmatpush1.msra.mxu0 0.0
        %475 = vmatprep.subr.mxu0 0.0
        %476 = vmatpush1.msra.mxu0 0.0
        %477 = vmatprep.subr.mxu0 0.0
        %478 = vmatpush1.msra.mxu0 0.0
        %479 = vmatprep.subr.mxu0 0.0
        %480 = vmatpush1.msra.mxu0 0.0
        %481 = vmatprep.subr.mxu0 0.0
        %482 = vmatpush1.msra.mxu0 0.0
        %483 = vmatprep.subr.mxu0 0.0
        %484 = vmatpush1.msra.mxu0 0.0
        %485 = vmatprep.subr.mxu0 0.0
        %486 = vmatpush1.msra.mxu0 0.0
        %487 = vmatprep.subr.mxu0 0.0
        %488 = vmatpush1.msra.mxu0 0.0
        %489 = vmatprep.subr.mxu0 0.0
        %490 = vmatpush1.msra.mxu0 0.0
        %491 = vmatprep.subr.mxu0 0.0
        %492 = vmatpush1.msra.mxu0 0.0
        %493 = vmatprep.subr.mxu0 0.0
        %494 = vmatpush1.msra.mxu0 0.0
        %495 = vmatprep.subr.mxu0 0.0
        %496 = vmatpush1.msra.mxu0 0.0
        %497 = vmatprep.subr.mxu0 0.0
        %498 = vmatpush1.msra.mxu0 0.0
        %499 = vmatprep.subr.mxu0 0.0
        %500 = vmatpush1.msra.mxu0 0.0
        %501 = vmatprep.subr.mxu0 0.0
        %502 = vmatpush1.msra.mxu0 0.0
        %503 = vmatprep.mubr.f32.mxu0 0.0
        %504 = vmatmul.mubr.f32.gmra.mrb[0].mxu0 %v231
        %v505 = vpop.f32.mrb[0].mxu0
        %v506 = vadd.f32 %v225, %v505
        %v507 = vpop.f32.mrb[0].mxu0
        %508 = vmatprep.mubr.f32.mxu0 0.0
        %509 = vmatmul.mubr.f32.gmra.mrb[0].mxu0 %v234
        %v510 = vpop.f32.mrb[0].mxu0
        %v511 = vadd.f32 %v225, %v510
        %v512 = vpop.f32.mrb[0].mxu0
        %513 = vmatprep.mubr.f32.mxu0 0.0
        %514 = vmatmul.mubr.f32.gmra.mrb[0].mxu0 %v237
        %v515 = vpop.f32.mrb[0].mxu0
        %v516 = vadd.f32 %v225, %v515
        %v517 = vpop.f32.mrb[0].mxu0
        %518 = vmatprep.mubr.f32.mxu0 0.0
        %519 = vmatmul.mubr.f32.gmra.mrb[0].mxu0 %v240
        %v520 = vpop.f32.mrb[0].mxu0
        %v521 = vadd.f32 %v225, %v520
        %v522 = vpop.f32.mrb[0].mxu0
        %523 = vmatprep.mubr.f32.mxu0 0.0
        %524 = vmatmul.mubr.f32.gmra.mrb[0].mxu0 %v243
        %v525 = vpop.f32.mrb[0].mxu0
        %v526 = vadd.f32 %v225, %v525
        %v527 = vpop.f32.mrb[0].mxu0
        %528 = vmatprep.mubr.f32.mxu0 0.0
        %529 = vmatmul.mubr.f32.gmra.mrb[0].mxu0 %v246
        %v530 = vpop.f32.mrb[0].mxu0
        %v531 = vadd.f32 %v225, %v530
        %v532 = vpop.f32.mrb[0].mxu0
        %533 = vmatprep.mubr.f32.mxu0 0.0
        %534 = vmatmul.mubr.f32.gmra.mrb[0].mxu0 %v249
        %v535 = vpop.f32.mrb[0].mxu0
        %v536 = vadd.f32 %v225, %v535
        %v537 = vpop.f32.mrb[0].mxu0
        %538 = vmatprep.mubr.f32.mxu0 0.0
        %539 = vmatmul.mubr.f32.gmra.mrb[0].mxu0 %v252
        %v540 = vpop.f32.mrb[0].mxu0
        %v541 = vadd.f32 %v225, %v540
        %v542 = vpop.f32.mrb[0].mxu0
        %543 = vmatprep.mubr.f32.mxu0 0.0
        %544 = vmatmul.mubr.f32.gmra.mrb[0].mxu0 %v255
        %v545 = vpop.f32.mrb[0].mxu0
        %v546 = vadd.f32 %v225, %v545
        %v547 = vpop.f32.mrb[0].mxu0
        %548 = vmatprep.mubr.f32.mxu0 0.0
        %549 = vmatmul.mubr.f32.gmra.mrb[0].mxu0 %v258
        %v550 = vpop.f32.mrb[0].mxu0
        %v551 = vadd.f32 %v225, %v550
        %v552 = vpop.f32.mrb[0].mxu0
        %553 = vmatprep.mubr.f32.mxu0 0.0
        %554 = vmatmul.mubr.f32.gmra.mrb[0].mxu0 %v261
        %v555 = vpop.f32.mrb[0].mxu0
        %v556 = vadd.f32 %v225, %v555
        %v557 = vpop.f32.mrb[0].mxu0
        %558 = vmatprep.mubr.f32.mxu0 0.0
        %559 = vmatmul.mubr.f32.gmra.mrb[0].mxu0 %v264
        %v560 = vpop.f32.mrb[0].mxu0
        %v561 = vadd.f32 %v225, %v560
        %v562 = vpop.f32.mrb[0].mxu0
        %563 = vmatprep.mubr.f32.mxu0 0.0
        %564 = vmatmul.mubr.f32.gmra.mrb[0].mxu0 %v267
        %v565 = vpop.f32.mrb[0].mxu0
        %v566 = vadd.f32 %v225, %v565
        %v567 = vpop.f32.mrb[0].mxu0
        %568 = vmatprep.mubr.f32.mxu0 0.0
        %569 = vmatmul.mubr.f32.gmra.mrb[0].mxu0 %v270
        %v570 = vpop.f32.mrb[0].mxu0
        %v571 = vadd.f32 %v225, %v570
        %v572 = vpop.f32.mrb[0].mxu0
        %573 = vmatprep.mubr.f32.mxu0 0.0
        %574 = vmatmul.mubr.f32.gmra.mrb[0].mxu0 %v273
        %v575 = vpop.f32.mrb[0].mxu0
        %v576 = vadd.f32 %v225, %v575
        %v577 = vpop.f32.mrb[0].mxu0
        %578 = vmatprep.mubr.f32.mxu0 0.0
        %579 = vmatmul.mubr.f32.gmra.mrb[0].mxu0 %v276
        %v580 = vpop.f32.mrb[0].mxu0
        %v581 = vadd.f32 %v225, %v580
        %v582 = vpop.f32.mrb[0].mxu0
        %583 = vdwg.mxu0
        %584 = vst [vmem:[%s164] sm:$0xff] %v345
        %585 = vst [vmem:[%s164 + $0x8] sm:$0xff] %v347
        %586 = vst [vmem:[%s164 + $0x10] sm:$0xff] %v506
        %587 = vst [vmem:[%s164 + $0x18] sm:$0xff] %v351
        %588 = vst [vmem:[%s164 + $0x20] sm:$0xff] %v353
        %589 = vst [vmem:[%s164 + $0x28] sm:$0xff] %v511
        %590 = vst [vmem:[%s164 + $0x30] sm:$0xff] %v357
        %591 = vst [vmem:[%s164 + $0x38] sm:$0xff] %v359
        %592 = vst [vmem:[%s164 + $0x40] sm:$0xff] %v516
        %593 = vst [vmem:[%s164 + $0x48] sm:$0xff] %v363
        %594 = vst [vmem:[%s164 + $0x50] sm:$0xff] %v365
        %595 = vst [vmem:[%s164 + $0x58] sm:$0xff] %v521
        %596 = vst [vmem:[%s164 + $0x60] sm:$0xff] %v369
        %597 = vst [vmem:[%s164 + $0x68] sm:$0xff] %v371
        %598 = vst [vmem:[%s164 + $0x70] sm:$0xff] %v526
        %599 = vst [vmem:[%s164 + $0x78] sm:$0xff] %v375
        %600 = vst [vmem:[%s164 + $0x80] sm:$0xff] %v377
        %601 = vst [vmem:[%s164 + $0x88] sm:$0xff] %v531
        %602 = vst [vmem:[%s164 + $0x90] sm:$0xff] %v381
        %603 = vst [vmem:[%s164 + $0x98] sm:$0xff] %v383
        %604 = vst [vmem:[%s164 + $0xa0] sm:$0xff] %v536
        %605 = vst [vmem:[%s164 + $0xa8] sm:$0xff] %v387
        %606 = vst [vmem:[%s164 + $0xb0] sm:$0xff] %v389
        %607 = vst [vmem:[%s164 + $0xb8] sm:$0xff] %v541
        %608 = vst [vmem:[%s164 + $0xc0] sm:$0xff] %v393
        %609 = vst [vmem:[%s164 + $0xc8] sm:$0xff] %v395
        %610 = vst [vmem:[%s164 + $0xd0] sm:$0xff] %v546
        %611 = vst [vmem:[%s164 + $0xd8] sm:$0xff] %v399
        %612 = vst [vmem:[%s164 + $0xe0] sm:$0xff] %v401
        %613 = vst [vmem:[%s164 + $0xe8] sm:$0xff] %v551
        %614 = vst [vmem:[%s164 + $0xf0] sm:$0xff] %v405
        %615 = vst [vmem:[%s164 + $0xf8] sm:$0xff] %v407
        %616 = vst [vmem:[%s164 + $0x100] sm:$0xff] %v556
        %617 = vst [vmem:[%s164 + $0x108] sm:$0xff] %v411
        %618 = vst [vmem:[%s164 + $0x110] sm:$0xff] %v413
        %619 = vst [vmem:[%s164 + $0x118] sm:$0xff] %v561
        %620 = vst [vmem:[%s164 + $0x120] sm:$0xff] %v417
        %621 = vst [vmem:[%s164 + $0x128] sm:$0xff] %v419
        %622 = vst [vmem:[%s164 + $0x130] sm:$0xff] %v566
        %623 = vst [vmem:[%s164 + $0x138] sm:$0xff] %v423
        %624 = vst [vmem:[%s164 + $0x140] sm:$0xff] %v425
        %625 = vst [vmem:[%s164 + $0x148] sm:$0xff] %v571
        %626 = vst [vmem:[%s164 + $0x150] sm:$0xff] %v429
        %627 = vst [vmem:[%s164 + $0x158] sm:$0xff] %v431
        %628 = vst [vmem:[%s164 + $0x160] sm:$0xff] %v576
        %629 = vst [vmem:[%s164 + $0x168] sm:$0xff] %v435
        %630 = vst [vmem:[%s164 + $0x170] sm:$0xff] %v437
        %631 = vst [vmem:[%s164 + $0x178] sm:$0xff] %v581
        %s632 = sand.u32 %s93, 1
        %s633 = scalar_lea.sflag [#allocation3], %s632
        %s634 = sand.u32 %s93, 1
        %s635 = smul.addr %s634, 384
        %s636 = scalar_lea.vmem [#allocation2], %s635
        // Predicated region
        $region33: #{tpu_custom_call.1} parent=31 // pred_check
          %p637 = pneg %p103
        $region34: #{tpu_custom_call.1} parent=31 // pred_check_branch
          %639 = sbr.rel (%p637) target = $region36
        $region35: #{tpu_custom_call.1} parent=31 // pred_region
          %s640 = smul.u32 16, %s17
          %s642 = ssub.s32 6144, 6144
          %643 = vsyncadd %s633, %s642
          %s644 = smul.addr %s640, 3
          %s645 = smul.addr %s644, 128
          %s646 = scalar_lea.hbm %s3, %s645
          %s647 = sshll.u32 %s636, 4
          %s648 = int_to_ptr.vmem [resolvable:$true] %s647
          %653 = dma.vmem_to_hbm [thread:$0]  %s648, 6144, %s646, %s633, 384, 384, 24
        $region36: #{tpu_custom_call.1} parent=31 // pred_fallthru
          _
      $region32: #{tpu_custom_call.1} parent=5 // pred_fallthru
        _
      %p654 = scmp.le.s32.totalorder 2, %s12
      // Predicated region
      $region37: #{tpu_custom_call.1} parent=5 // pred_check
        %p655 = pneg %p654
      $region38: #{tpu_custom_call.1} parent=5 // pred_check_branch
        %657 = sbr.rel (%p655) target = $region40
      $region39: #{tpu_custom_call.1} parent=5 // pred_region
        %s658 = ssub.s32 %s12, 2
        // Predicated region
        $region41: #{tpu_custom_call.1} parent=39 // pred_check
          %p659 = pneg %p109
        $region42: #{tpu_custom_call.1} parent=39 // pred_check_branch
          %661 = sbr.rel (%p659) target = $region44
        $region43: #{tpu_custom_call.1} parent=39 // pred_region
          %s662 = sand.u32 %s94, 1
          %s663 = scalar_lea.sflag [#allocation3], %s662
          %s664 = sand.u32 %s94, 1
          %s665 = smul.addr %s664, 384
          %s666 = scalar_lea.vmem [#allocation2], %s665
          %667 = dma.done %s663, 6144
        $region44: #{tpu_custom_call.1} parent=39 // pred_fallthru
          _
      $region40: #{tpu_custom_call.1} parent=5 // pred_fallthru
        _
    $region6: #{tpu_custom_call.1} parent=1 // loop_footer
      %s16 = sadd.s32 1, %s12
    $region7: #{tpu_custom_call.1} parent=1 // loop_footer_branch
      %11 = sbr.rel target = $region3
    $region8: #{tpu_custom_call.1} parent=1 // loop_exit
      _
    %668 = vsyncpa [#allocation3], 1
    %s669 = scalar_lea.sflag [#allocation3], 1
    %670 = vsyncpa %s669, 1

</llo_original>
